<compile_context>
chip_gen: v7x
topology: tpu7x:2x2x1
jax: 0.10.0
libtpu: 0.0.40
codegen_flags: <defaults>
</compile_context>

<pallas_src>
import functools

import jax
import jax.numpy as jnp
from jax.experimental import pallas as pl
from jax.experimental.pallas import tpu as pltpu


def _round_up(x, m):
    return ((x + m - 1) // m) * m


def _fused_adapter_kernel(x_ref, wd_ref, wu_ref, vec_ref, o_ref, acc_ref, *,
                          eps, d_real, bp, num_layers, non_linearity,
                          gelu_approximate, weights_resident):
    # x_ref:   (TM, Dp)           input rows (padded feature lanes are zero)
    # wd_ref:  (L or 1, Dp, Bp)   down-proj weights (all layers if resident)
    # wu_ref:  (L or 1, Bp, Dp)   up-proj weights
    # vec_ref: (L or 1, 8, Vw) f32 packed vectors: row0=down bias (first Bp
    #          lanes), row1=up bias, row2=LN gamma, row3=LN beta, rows 4..7=0.
    # o_ref:   (TM, Dp)           output rows
    # acc_ref: (TM, Dp) f32       running activation, resident across layers
    layer = pl.program_id(1)

    @pl.when(layer == 0)
    def _():
        acc_ref[...] = x_ref[...].astype(jnp.float32)

    li = layer if weights_resident else 0

    x = acc_ref[...]                       # f32; padded lanes exactly zero
    dp = x.shape[-1]
    mm_dtype = wd_ref.dtype                # MXU operand dtype (bf16 by default)

    vecs = vec_ref[li].astype(jnp.float32)     # (8, Vw)
    bd = vecs[0:1, :bp]
    bu = vecs[1:2, :dp]
    gamma = vecs[2:3, :dp]
    beta = vecs[3:4, :dp]

    # down projection + non-linearity (MXU, f32 accumulation)
    h = jnp.dot(x.astype(mm_dtype), wd_ref[li],
                preferred_element_type=jnp.float32) + bd
    if non_linearity == "relu":
        h = jnp.maximum(h, 0.0)
    else:  # 'gelu' (exact by default == torch.nn.GELU; tanh approx opt-in)
        h = jax.nn.gelu(h, approximate=gelu_approximate)

    # up projection + residual
    u = jnp.dot(h.astype(mm_dtype), wu_ref[li],
                preferred_element_type=jnp.float32)
    y = x + u + bu

    # LayerNorm over the real width d_real (biased variance, torch semantics).
    # Padded lanes of y are zero so the unmasked sums already equal the
    # real-lane sums; two independent reductions + clamped one-pass variance
    # shorten the XLU/VALU dependency chain.
    inv_d = jnp.float32(1.0 / d_real)
    mean = jnp.sum(y, axis=-1, keepdims=True) * inv_d
    mean_sq = jnp.sum(y * y, axis=-1, keepdims=True) * inv_d
    var = jnp.maximum(mean_sq - mean * mean, 0.0)
    out = (y - mean) * jax.lax.rsqrt(var + eps) * gamma + beta
    # padded lanes: gamma = beta = 0  ->  out stays zero there.

    acc_ref[...] = out

    @pl.when(layer == num_layers - 1)
    def _():
        o_ref[...] = out.astype(o_ref.dtype)


def task_specific_adapter_block(hidden_states, params, *, eps=1e-12,
                                non_linearity="relu", gelu_approximate=False,
                                matmul_dtype=jnp.bfloat16):
    """hidden_states: [batch, seq, input_dim]; params: list of per-layer dicts."""
    if non_linearity not in ("relu", "gelu"):
        raise ValueError(f"Unknown non-linearity: {non_linearity}")

    Bsz, S, D = hidden_states.shape
    L = len(params)
    dtype = hidden_states.dtype
    M = Bsz * S

    # Padded widths: lane-dense MXU tiles, unmasked stores.
    Dp = _round_up(D, 128)
    Bn = jnp.asarray(params[0]["wd"]).shape[1]
    Bp = _round_up(Bn, 128) if Bn <= 128 else _round_up(Bn, 256)
    Vw = max(Dp, Bp)

    # Matmul operand dtype: bf16 by default when params are wider; never upcast.
    param_dtype = jnp.asarray(params[0]["wd"]).dtype
    if matmul_dtype is None:
        w_dtype = jnp.dtype(param_dtype)
    else:
        w_dtype = jnp.dtype(matmul_dtype)
        if jnp.dtype(param_dtype).itemsize < w_dtype.itemsize:
            w_dtype = jnp.dtype(param_dtype)
    w_item = w_dtype.itemsize
    a_item = jnp.dtype(dtype).itemsize

    # ---- VMEM budgeting --------------------------------------------------
    try:
        vmem_cap = int(pltpu.get_tpu_info().vmem_capacity_bytes)
    except Exception:
        vmem_cap = 64 * 1024 * 1024          # v7x per-TC floor; safe everywhere

    per_layer_w_bytes = w_item * 2 * Dp * Bp + 4 * 8 * Vw
    resident_w_bytes = 2 * L * per_layer_w_bytes         # x2: buffer allocation
    weights_resident = resident_w_bytes <= int(0.35 * vmem_cap)
    w_footprint = resident_w_bytes if weights_resident else 2 * per_layer_w_bytes

    budget = int(0.55 * vmem_cap)
    act_bytes_per_row = Dp * (4 + 4 * a_item)   # f32 acc + dbl-buffered in/out
    avail = max(budget - w_footprint, 8 * act_bytes_per_row)

    sub = {1: 32, 2: 16}.get(a_item, 8)          # sublane multiple for dtype
    TM = min(2048, max(sub, (avail // act_bytes_per_row) // sub * sub))
    m_ceil = _round_up(M, sub)
    if m_ceil >= 2 * sub:                        # keep >=2 row tiles (megacore)
        TM = min(TM, _round_up((M + 1) // 2, sub))
    TM = max(sub, min(TM, m_ceil))
    Mp = _round_up(M, TM)

    est = w_footprint + TM * act_bytes_per_row
    vmem_limit = int(min(max(int(1.4 * est), 32 * 1024 * 1024),
                         100 * 1024 * 1024, vmem_cap - 2 * 1024 * 1024))

    # ---- operand packing (copies only when padding is actually needed) ----
    x2d = hidden_states.reshape(M, D)
    needs_pad = (D != Dp) or (M != Mp)
    x_in = (jnp.zeros((Mp, Dp), dtype).at[:M, :D].set(x2d)
            if needs_pad else x2d)

    def pad_w(a, r, c):
        a = jnp.asarray(a)
        if a.shape == (r, c) and a.dtype == w_dtype:
            return a
        out = jnp.zeros((r, c), w_dtype)
        return out.at[:a.shape[0], :a.shape[1]].set(a.astype(w_dtype))

    wd = jnp.stack([pad_w(p["wd"], Dp, Bp) for p in params])     # (L, Dp, Bp)
    wu = jnp.stack([pad_w(p["wu"], Bp, Dp) for p in params])     # (L, Bp, Dp)

    def pack_vecs(p):
        v = jnp.zeros((8, Vw), jnp.float32)
        v = v.at[0, :Bn].set(jnp.asarray(p["bd"], jnp.float32).reshape(-1))
        v = v.at[1, :D].set(jnp.asarray(p["bu"], jnp.float32).reshape(-1))
        v = v.at[2, :D].set(jnp.asarray(p["gamma"], jnp.float32).reshape(-1))
        v = v.at[3, :D].set(jnp.asarray(p["beta"], jnp.float32).reshape(-1))
        return v
    vecs = jnp.stack([pack_vecs(p) for p in params])             # (L, 8, Vw)

    if weights_resident:
        wd_spec = pl.BlockSpec((L, Dp, Bp), lambda i, l: (0, 0, 0))
        wu_spec = pl.BlockSpec((L, Bp, Dp), lambda i, l: (0, 0, 0))
        vec_spec = pl.BlockSpec((L, 8, Vw), lambda i, l: (0, 0, 0))
    else:
        wd_spec = pl.BlockSpec((1, Dp, Bp), lambda i, l: (l, 0, 0))
        wu_spec = pl.BlockSpec((1, Bp, Dp), lambda i, l: (l, 0, 0))
        vec_spec = pl.BlockSpec((1, 8, Vw), lambda i, l: (l, 0, 0))

    kernel = functools.partial(
        _fused_adapter_kernel, eps=float(eps), d_real=D, bp=Bp,
        num_layers=L, non_linearity=non_linearity,
        gelu_approximate=bool(gelu_approximate),
        weights_resident=weights_resident)

    out = pl.pallas_call(
        kernel,
        out_shape=jax.ShapeDtypeStruct((Mp, Dp), dtype),
        grid_spec=pltpu.PrefetchScalarGridSpec(
            num_scalar_prefetch=0,
            grid=(Mp // TM, L),
            in_specs=[
                pl.BlockSpec((TM, Dp), lambda i, l: (i, 0)),     # activations
                wd_spec, wu_spec, vec_spec,
            ],
            out_specs=pl.BlockSpec((TM, Dp), lambda i, l: (i, 0)),
            scratch_shapes=[pltpu.VMEM((TM, Dp), jnp.float32)],
        ),
        compiler_params=pltpu.CompilerParams(
            dimension_semantics=("parallel", "arbitrary"),
            vmem_limit_bytes=vmem_limit),
    )(x_in, wd, wu, vecs)

    out2d = out[:M, :D] if needs_pad else out
    return out2d.reshape(Bsz, S, D)


def init_params(key, input_dim, bottleneck_dim, num_layers,
                adapter_initializer_range=0.01, dtype=jnp.float32):
    """Random-init params (i.i.d. normal), stored directly in (in, out) layout.

    To load a real PyTorch checkpoint, transpose nn.Linear.weight
    ((out, in) -> (in, out)) before building these dicts.
    """
    params = []
    for _ in range(num_layers):
        key, k1, k2 = jax.random.split(key, 3)
        wd = (adapter_initializer_range *
              jax.random.normal(k1, (input_dim, bottleneck_dim))).astype(dtype)
        bd = jnp.zeros((1, bottleneck_dim), dtype)
        wu = (adapter_initializer_range *
              jax.random.normal(k2, (bottleneck_dim, input_dim))).astype(dtype)
        bu = jnp.zeros((1, input_dim), dtype)
        gamma = jnp.ones((1, input_dim), dtype)
        beta = jnp.zeros((1, input_dim), dtype)
        params.append(dict(wd=wd, bd=bd, wu=wu, bu=bu, gamma=gamma, beta=beta))
    return params


def _reference(hidden_states, params, eps=1e-12):
    """Pure-JAX f32 reference matching the PyTorch module (relu path)."""
    Bsz, S, D = hidden_states.shape
    x = hidden_states.reshape(Bsz * S, D).astype(jnp.float32)
    for p in params:
        h = jnp.maximum(x @ p["wd"].astype(jnp.float32)
                        + p["bd"].reshape(1, -1).astype(jnp.float32), 0.0)
        y = x + h @ p["wu"].astype(jnp.float32) \
            + p["bu"].reshape(1, -1).astype(jnp.float32)
        mean = y.mean(-1, keepdims=True)
        var = ((y - mean) ** 2).mean(-1, keepdims=True)
        x = ((y - mean) / jnp.sqrt(var + eps)
             * p["gamma"].reshape(1, -1).astype(jnp.float32)
             + p["beta"].reshape(1, -1).astype(jnp.float32))
    return x.reshape(Bsz, S, D)


if __name__ == "__main__":
    batch, seq, input_dim, bottleneck_dim, num_layers = 2, 8, 32, 8, 2
    key = jax.random.PRNGKey(0)
    key, kx = jax.random.split(key)
    x = jax.random.normal(kx, (batch, seq, input_dim), dtype=jnp.float32)

    params = init_params(key, input_dim, bottleneck_dim, num_layers)
    ref = _reference(x, params, eps=1e-12)

    # 1) f32 MXU operands: tight comparison against the f32 reference.
    out_f32 = jax.block_until_ready(
        task_specific_adapter_block(x, params, eps=1e-12, matmul_dtype=None))
    assert out_f32.shape == (batch, seq, input_dim)
    assert jnp.all(jnp.isfinite(out_f32))
    assert jnp.allclose(out_f32.astype(jnp.float32), ref, atol=1e-4, rtol=1e-4), \
        float(jnp.max(jnp.abs(out_f32.astype(jnp.float32) - ref)))

    # 2) Default fast path (bf16 MXU operands): looser tolerance.
    out_bf16 = jax.block_until_ready(
        task_specific_adapter_block(x, params, eps=1e-12))
    assert out_bf16.shape == (batch, seq, input_dim)
    assert jnp.all(jnp.isfinite(out_bf16))
    assert jnp.allclose(out_bf16.astype(jnp.float32), ref, atol=3e-2, rtol=3e-2), \
        float(jnp.max(jnp.abs(out_bf16.astype(jnp.float32) - ref)))

    print("KERNEL_OK")
</pallas_src>

<mosaic_0001>
module attributes {stable_mosaic.version = 11 : i64} {
  func.func @_fused_adapter_kernel(%arg0: i32, %arg1: i32, %arg2: memref<8x128xf32, #tpu.memory_space<vmem>>, %arg3: memref<2x128x128xf32, #tpu.memory_space<vmem>>, %arg4: memref<2x128x128xf32, #tpu.memory_space<vmem>>, %arg5: memref<2x8x128xf32, #tpu.memory_space<vmem>>, %arg6: memref<8x128xf32, #tpu.memory_space<vmem>>, %arg7: memref<8x128xf32, #tpu.memory_space<vmem>>) attributes {dimension_semantics = [#tpu.dimension_semantics<parallel>, #tpu.dimension_semantics<arbitrary>], iteration_bounds = array<i64: 2, 2>, scalar_prefetch = 0 : i64, scratch_operands = 1 : i64, tpu.core_type = #tpu.core_type<tc>, window_params = [{transform_indices = @transform_0, window_bounds = array<i64: 8, 128>}, {pipeline_mode = #tpu.pipeline_mode<synchronous>, transform_indices = @transform_1, window_bounds = array<i64: 2, 128, 128>}, {pipeline_mode = #tpu.pipeline_mode<synchronous>, transform_indices = @transform_2, window_bounds = array<i64: 2, 128, 128>}, {pipeline_mode = #tpu.pipeline_mode<synchronous>, transform_indices = @transform_3, window_bounds = array<i64: 2, 8, 128>}, {transform_indices = @transform_4, window_bounds = array<i64: 8, 128>}]} {
    %c0_i32 = arith.constant 0 : i32
    %0 = arith.cmpi eq, %arg1, %c0_i32 : i32
    %1 = arith.extui %0 : i1 to i32
    %c0_i32_0 = arith.constant 0 : i32
    %2 = arith.cmpi ne, %1, %c0_i32_0 : i32
    scf.if %2 {
      %c0_19 = arith.constant 0 : index
      %c0_20 = arith.constant 0 : index
      %54 = vector.load %arg2[%c0_19, %c0_20] : memref<8x128xf32, #tpu.memory_space<vmem>>, vector<8x128xf32>
      %c0_21 = arith.constant 0 : index
      %c0_22 = arith.constant 0 : index
      %55 = vector.load %arg7[%c0_21, %c0_22] : memref<8x128xf32, #tpu.memory_space<vmem>>, vector<8x128xf32>
      tpu.vector_store %arg7[%c0_21, %c0_22], %54 {strides = array<i32>} : memref<8x128xf32, #tpu.memory_space<vmem>>, vector<8x128xf32>,
    } else {
    }
    %c0 = arith.constant 0 : index
    %c0_1 = arith.constant 0 : index
    %3 = vector.load %arg7[%c0, %c0_1] : memref<8x128xf32, #tpu.memory_space<vmem>>, vector<8x128xf32>
    %4 = arith.index_cast %arg1 : i32 to index
    %c0_2 = arith.constant 0 : index
    %c0_3 = arith.constant 0 : index
    %5 = vector.load %arg5[%4, %c0_2, %c0_3] : memref<2x8x128xf32, #tpu.memory_space<vmem>>, vector<1x8x128xf32>
    %6 = vector.shape_cast %5 : vector<1x8x128xf32> to vector<8x128xf32>
    %7 = vector.extract_strided_slice %6 {offsets = [0, 0], sizes = [1, 128], strides = [1, 1]} : vector<8x128xf32> to vector<1x128xf32>
    %8 = vector.extract_strided_slice %6 {offsets = [1, 0], sizes = [1, 128], strides = [1, 1]} : vector<8x128xf32> to vector<1x128xf32>
    %9 = vector.extract_strided_slice %6 {offsets = [2, 0], sizes = [1, 128], strides = [1, 1]} : vector<8x128xf32> to vector<1x128xf32>
    %10 = vector.extract_strided_slice %6 {offsets = [3, 0], sizes = [1, 128], strides = [1, 1]} : vector<8x128xf32> to vector<1x128xf32>
    %11 = arith.index_cast %arg1 : i32 to index
    %c0_4 = arith.constant 0 : index
    %c0_5 = arith.constant 0 : index
    %12 = vector.load %arg3[%11, %c0_4, %c0_5] : memref<2x128x128xf32, #tpu.memory_space<vmem>>, vector<1x128x128xf32>
    %13 = vector.shape_cast %12 : vector<1x128x128xf32> to vector<128x128xf32>
    %cst = arith.constant dense<0.000000e+00> : vector<8x128xf32>
    %14 = tpu.matmul %3, %13, %cst {dimension_numbers = #tpu.dot_dimension_numbers<[1], [0], [0], [1], [0, 0, 1, 1], [], []>} : vector<8x128xf32>, vector<128x128xf32>, vector<8x128xf32> -> vector<8x128xf32>
    %15 = vector.broadcast %7 : vector<1x128xf32> to vector<8x128xf32>
    %16 = arith.addf %14, %15 : vector<8x128xf32>
    %cst_6 = arith.constant 0.000000e+00 : f32
    %17 = vector.broadcast %cst_6 : f32 to vector<8x128xf32>
    %18 = arith.maximumf %16, %17 : vector<8x128xf32>
    %19 = arith.index_cast %arg1 : i32 to index
    %c0_7 = arith.constant 0 : index
    %c0_8 = arith.constant 0 : index
    %20 = vector.load %arg4[%19, %c0_7, %c0_8] : memref<2x128x128xf32, #tpu.memory_space<vmem>>, vector<1x128x128xf32>
    %21 = vector.shape_cast %20 : vector<1x128x128xf32> to vector<128x128xf32>
    %cst_9 = arith.constant dense<0.000000e+00> : vector<8x128xf32>
    %22 = tpu.matmul %18, %21, %cst_9 {dimension_numbers = #tpu.dot_dimension_numbers<[1], [0], [0], [1], [0, 0, 1, 1], [], []>} : vector<8x128xf32>, vector<128x128xf32>, vector<8x128xf32> -> vector<8x128xf32>
    %23 = arith.addf %3, %22 : vector<8x128xf32>
    %24 = vector.broadcast %8 : vector<1x128xf32> to vector<8x128xf32>
    %25 = arith.addf %23, %24 : vector<8x128xf32>
    %cst_10 = arith.constant dense<0.000000e+00> : vector<8xf32>
    %26 = vector.multi_reduction <add>, %25, %cst_10 [1] : vector<8x128xf32> to vector<8xf32>
    %27 = vector.shape_cast %26 : vector<8xf32> to vector<8x1xf32>
    %cst_11 = arith.constant 3.125000e-02 : f32
    %28 = vector.broadcast %cst_11 : f32 to vector<8x1xf32>
    %29 = arith.mulf %27, %28 : vector<8x1xf32>
    %30 = arith.mulf %25, %25 : vector<8x128xf32>
    %cst_12 = arith.constant dense<0.000000e+00> : vector<8xf32>
    %31 = vector.multi_reduction <add>, %30, %cst_12 [1] : vector<8x128xf32> to vector<8xf32>
    %32 = vector.shape_cast %31 : vector<8xf32> to vector<8x1xf32>
    %cst_13 = arith.constant 3.125000e-02 : f32
    %33 = vector.broadcast %cst_13 : f32 to vector<8x1xf32>
    %34 = arith.mulf %32, %33 : vector<8x1xf32>
    %35 = arith.mulf %29, %29 : vector<8x1xf32>
    %36 = arith.subf %34, %35 : vector<8x1xf32>
    %cst_14 = arith.constant 0.000000e+00 : f32
    %37 = vector.broadcast %cst_14 : f32 to vector<8x1xf32>
    %38 = arith.maximumf %36, %37 : vector<8x1xf32>
    %39 = vector.broadcast %29 : vector<8x1xf32> to vector<8x128xf32>
    %40 = arith.subf %25, %39 : vector<8x128xf32>
    %cst_15 = arith.constant 9.99999996E-13 : f32
    %41 = vector.broadcast %cst_15 : f32 to vector<8x1xf32>
    %42 = arith.addf %38, %41 : vector<8x1xf32>
    %43 = math.rsqrt %42 : vector<8x1xf32>
    %44 = vector.broadcast %43 : vector<8x1xf32> to vector<8x128xf32>
    %45 = arith.mulf %40, %44 : vector<8x128xf32>
    %46 = vector.broadcast %9 : vector<1x128xf32> to vector<8x128xf32>
    %47 = arith.mulf %45, %46 : vector<8x128xf32>
    %48 = vector.broadcast %10 : vector<1x128xf32> to vector<8x128xf32>
    %49 = arith.addf %47, %48 : vector<8x128xf32>
    %c0_16 = arith.constant 0 : index
    %c0_17 = arith.constant 0 : index
    %50 = vector.load %arg7[%c0_16, %c0_17] : memref<8x128xf32, #tpu.memory_space<vmem>>, vector<8x128xf32>
    tpu.vector_store %arg7[%c0_16, %c0_17], %49 {strides = array<i32>} : memref<8x128xf32, #tpu.memory_space<vmem>>, vector<8x128xf32>,
    %c1_i32 = arith.constant 1 : i32
    %51 = arith.cmpi eq, %arg1, %c1_i32 : i32
    %52 = arith.extui %51 : i1 to i32
    %c0_i32_18 = arith.constant 0 : i32
    %53 = arith.cmpi ne, %52, %c0_i32_18 : i32
    scf.if %53 {
      %c0_19 = arith.constant 0 : index
      %c0_20 = arith.constant 0 : index
      %54 = vector.load %arg6[%c0_19, %c0_20] : memref<8x128xf32, #tpu.memory_space<vmem>>, vector<8x128xf32>
      tpu.vector_store %arg6[%c0_19, %c0_20], %49 {strides = array<i32>} : memref<8x128xf32, #tpu.memory_space<vmem>>, vector<8x128xf32>,
    } else {
    }
    return
  }
  func.func @transform_0(%arg0: i32, %arg1: i32) -> (i32, i32) {
    %c0_i32 = arith.constant 0 : i32
    %c0_i32_0 = arith.constant 0 : i32
    return %arg0, %c0_i32 : i32, i32
  }
  func.func @transform_1(%arg0: i32, %arg1: i32) -> (i32, i32, i32) {
    %c0_i32 = arith.constant 0 : i32
    %c0_i32_0 = arith.constant 0 : i32
    %c0_i32_1 = arith.constant 0 : i32
    %c0_i32_2 = arith.constant 0 : i32
    return %c0_i32, %c0_i32_0, %c0_i32_1 : i32, i32, i32
  }
  func.func @transform_2(%arg0: i32, %arg1: i32) -> (i32, i32, i32) {
    %c0_i32 = arith.constant 0 : i32
    %c0_i32_0 = arith.constant 0 : i32
    %c0_i32_1 = arith.constant 0 : i32
    %c0_i32_2 = arith.constant 0 : i32
    return %c0_i32, %c0_i32_0, %c0_i32_1 : i32, i32, i32
  }
  func.func @transform_3(%arg0: i32, %arg1: i32) -> (i32, i32, i32) {
    %c0_i32 = arith.constant 0 : i32
    %c0_i32_0 = arith.constant 0 : i32
    %c0_i32_1 = arith.constant 0 : i32
    %c0_i32_2 = arith.constant 0 : i32
    return %c0_i32, %c0_i32_0, %c0_i32_1 : i32, i32, i32
  }
  func.func @transform_4(%arg0: i32, %arg1: i32) -> (i32, i32) {
    %c0_i32 = arith.constant 0 : i32
    %c0_i32_0 = arith.constant 0 : i32
    return %arg0, %c0_i32 : i32, i32
  }
}

</mosaic_0001>

<llo_original>
// kernel: tpu_custom_call.1
$region0: #{tpu_custom_call.1}
  #allocation0 [shape = 'u32[]', space=smem, size = 0x4, offset = 0x4, fixed_abs, tag = 'smem constant byte address 0x4 - core index']
  #allocation1 [shape = 'u32[144,128]{1,0:T(1,128)}', space=vmem, size = 0x12000, scoped, tag = 'internal scratch']
  #allocation2 [shape = 'f32[8,128]{1,0:T(8,128)}', space=vmem, size = 0x1000, scoped, tag = 'scratch operand']
  %s0 = inlined_call_operand.hbm [shape: f32[16,128], index: 0, kind: input, shape index: {}]
  %s1 = inlined_call_operand.hbm [shape: f32[2,128,128], index: 1, kind: input, shape index: {}]
  %s2 = inlined_call_operand.hbm [shape: f32[2,128,128], index: 2, kind: input, shape index: {}]
  %s3 = inlined_call_operand.hbm [shape: f32[2,8,128], index: 3, kind: input, shape index: {}]
  %s4 = inlined_call_operand.hbm [shape: f32[16,128], index: 4, kind: output, shape index: {}]
  %s5 = sld [smem:[#allocation0]]
  $region73: #{tpu_custom_call.1} parent=0
    _
  %s7 = ssub.s32 1, %s5
  %s8 = scalar_select 0, %s7, %s5
  $region1: #{tpu_custom_call.1} parent=0
    #allocation3 [shape = 'u8[8192]{0}', space=vmem, size = 0x2000, scoped, tag = 'input window, operand 0']
    #allocation4 [shape = 's32[2]{0}', space=sflag, size = 0x8, scoped, tag = 'scoped memory for tpu_custom_call.1']
    #allocation5 [shape = 's32[2]{0}', space=sflag, size = 0x8, scoped, tag = 'scoped memory for tpu_custom_call.1']
    #allocation6 [shape = 'u8[131072]{0}', space=vmem, size = 0x20000, scoped, tag = 'input window, operand 1, single buffered']
    #allocation7 [shape = 's32[1]{0}', space=sflag, size = 0x4, scoped, tag = 'scoped memory for tpu_custom_call.1']
    #allocation8 [shape = 'u8[131072]{0}', space=vmem, size = 0x20000, scoped, tag = 'input window, operand 2, single buffered']
    #allocation9 [shape = 'u8[8192]{0}', space=vmem, size = 0x2000, scoped, tag = 'input window, operand 3, single buffered']
    #allocation10 [shape = 's32[1]{0}', space=sflag, size = 0x4, scoped, tag = 'scoped memory for tpu_custom_call.1']
    #allocation11 [shape = 'u8[8192]{0}', space=vmem, size = 0x2000, scoped, tag = 'output window, operand 0']
    %9 = vsyncpa [#allocation4], 0
    %s10 = scalar_lea.sflag [#allocation4], 1
    %11 = vsyncpa %s10, 0
    %12 = vsyncpa [#allocation7], 0
    %13 = vsyncpa [#allocation10], 0
    %14 = vsyncpa [#allocation5], 0
    %s15 = scalar_lea.sflag [#allocation5], 1
    %16 = vsyncpa %s15, 0
    loop: start=0, step=1, limit=6
    $region2: #{tpu_custom_call.1} parent=1 // loop_pre_header
      _
    $region3: #{tpu_custom_call.1} parent=1 // loop_header
      %s18 = sphi 0, %s22
      %p19 = scmp.ge.s32.totalorder %s18, 6
      %s25 = sphi 0, %s37
      %s26 = sphi 0, %s33
      %s27 = sphi 0, %s25
      %s28 = sphi 0, %s26
      %s29 = sphi 0, %s27
      %s30 = sphi 0, %s28
      %s40 = sphi 0, %s42
      %s43 = sphi 0, %s40
      %s44 = sphi 0, %s43
      %s60 = sphi 0, %s44
      %s64 = sphi 0, %s64
      %s66 = sphi 0, %s64
      %s67 = sphi 0, %s66
      %s81 = sphi 0, %s67
      %s85 = sphi 0, %s85
      %s87 = sphi 0, %s85
      %s88 = sphi 0, %s87
      %s102 = sphi 0, %s88
      %s106 = sphi 0, %s106
      %s108 = sphi 0, %s106
      %s109 = sphi 0, %s108
      %s123 = sphi 0, %s109
      %s129 = sphi 0, %s131
      %s132 = sphi 0, %s129
      %s133 = sphi 0, %s132
      %s149 = sphi 0, %s133
    $region4: #{tpu_custom_call.1} parent=1 // loop_header_branch
      %21 = sbr.rel (%p19) target = $region8
    $region5: #{tpu_custom_call.1} parent=1 // loop_body
      %s23 = ssub.s32 %s18, 1
      %s24 = ssub.s32 %s18, 2
      %s31 = sadd.s32 1, %s26
      %p32 = scmp.ge.s32.totalorder %s31, 2
      %s33 = scalar_select %p32, 0, %s31
      %s34 = sadd.s32 1, %s25
      %s35 = scalar_select %p32, %s34, %s25
      %p36 = scmp.ge.s32.totalorder %s35, 2
      %s37 = scalar_select %p36, 0, %s35
      %s38 = ssub.s32 %s25, %s37
      %p39 = scmp.eq.s32.totalorder %s38, 0
      %s41 = sadd.s32 %s40, 1
      %s42 = scalar_select %p39, %s40, %s41
      %p45 = pneg %p39
      %p46 = scmp.eq.s32.totalorder %s18, 3
      %p47 = por %p45, %p46
      %p48 = scmp.ne.s32.totalorder %s40, %s43
      %p49 = scmp.eq.s32.totalorder %s18, 0
      %p50 = por %p48, %p49
      %p51 = scmp.ne.s32.totalorder %s40, %s43
      %p52 = scmp.eq.s32.totalorder %s23, 3
      %p53 = por %p51, %p52
      %p54 = scmp.ne.s32.totalorder %s43, %s44
      %p55 = scmp.eq.s32.totalorder %s23, 0
      %p56 = por %p54, %p55
      %p57 = scmp.ne.s32.totalorder %s43, %s44
      %p58 = scmp.eq.s32.totalorder %s24, 3
      %p59 = por %p57, %p58
      %p61 = scmp.ne.s32.totalorder %s44, %s60
      %p62 = scmp.eq.s32.totalorder %s24, 0
      %p63 = por %p61, %p62
      %s65 = sadd.s32 %s64, 1
      %p68 = scmp.eq.s32.totalorder %s18, 3
      %p69 = scmp.ne.s32.totalorder %s64, %s66
      %p70 = scmp.eq.s32.totalorder %s18, 0
      %p71 = por %p69, %p70
      %p72 = scmp.ne.s32.totalorder %s64, %s66
      %p73 = scmp.eq.s32.totalorder %s23, 3
      %p74 = por %p72, %p73
      %p75 = scmp.ne.s32.totalorder %s66, %s67
      %p76 = scmp.eq.s32.totalorder %s23, 0
      %p77 = por %p75, %p76
      %p78 = scmp.ne.s32.totalorder %s66, %s67
      %p79 = scmp.eq.s32.totalorder %s24, 3
      %p80 = por %p78, %p79
      %p82 = scmp.ne.s32.totalorder %s67, %s81
      %p83 = scmp.eq.s32.totalorder %s24, 0
      %p84 = por %p82, %p83
      %s86 = sadd.s32 %s85, 1
      %p89 = scmp.eq.s32.totalorder %s18, 3
      %p90 = scmp.ne.s32.totalorder %s85, %s87
      %p91 = scmp.eq.s32.totalorder %s18, 0
      %p92 = por %p90, %p91
      %p93 = scmp.ne.s32.totalorder %s85, %s87
      %p94 = scmp.eq.s32.totalorder %s23, 3
      %p95 = por %p93, %p94
      %p96 = scmp.ne.s32.totalorder %s87, %s88
      %p97 = scmp.eq.s32.totalorder %s23, 0
      %p98 = por %p96, %p97
      %p99 = scmp.ne.s32.totalorder %s87, %s88
      %p100 = scmp.eq.s32.totalorder %s24, 3
      %p101 = por %p99, %p100
      %p103 = scmp.ne.s32.totalorder %s88, %s102
      %p104 = scmp.eq.s32.totalorder %s24, 0
      %p105 = por %p103, %p104
      %s107 = sadd.s32 %s106, 1
      %p110 = scmp.eq.s32.totalorder %s18, 3
      %p111 = scmp.ne.s32.totalorder %s106, %s108
      %p112 = scmp.eq.s32.totalorder %s18, 0
      %p113 = por %p111, %p112
      %p114 = scmp.ne.s32.totalorder %s106, %s108
      %p115 = scmp.eq.s32.totalorder %s23, 3
      %p116 = por %p114, %p115
      %p117 = scmp.ne.s32.totalorder %s108, %s109
      %p118 = scmp.eq.s32.totalorder %s23, 0
      %p119 = por %p117, %p118
      %p120 = scmp.ne.s32.totalorder %s108, %s109
      %p121 = scmp.eq.s32.totalorder %s24, 3
      %p122 = por %p120, %p121
      %p124 = scmp.ne.s32.totalorder %s109, %s123
      %p125 = scmp.eq.s32.totalorder %s24, 0
      %p126 = por %p124, %p125
      %s127 = ssub.s32 %s25, %s37
      %p128 = scmp.eq.s32.totalorder %s127, 0
      %s130 = sadd.s32 %s129, 1
      %s131 = scalar_select %p128, %s129, %s130
      %p134 = pneg %p128
      %p135 = scmp.eq.s32.totalorder %s18, 3
      %p136 = por %p134, %p135
      %p137 = scmp.ne.s32.totalorder %s129, %s132
      %p138 = scmp.eq.s32.totalorder %s18, 0
      %p139 = por %p137, %p138
      %p140 = scmp.ne.s32.totalorder %s129, %s132
      %p141 = scmp.eq.s32.totalorder %s23, 3
      %p142 = por %p140, %p141
      %p143 = scmp.ne.s32.totalorder %s132, %s133
      %p144 = scmp.eq.s32.totalorder %s23, 0
      %p145 = por %p143, %p144
      %p146 = scmp.ne.s32.totalorder %s132, %s133
      %p147 = scmp.eq.s32.totalorder %s24, 3
      %p148 = por %p146, %p147
      %p150 = scmp.ne.s32.totalorder %s133, %s149
      %p151 = scmp.eq.s32.totalorder %s24, 0
      %p152 = por %p150, %p151
      %p153 = scmp.le.s32.totalorder 1, %s18
      %p154 = scmp.lt.s32.totalorder %s18, 5
      %p155 = pnand %p153, %p154
      %p156 = pneg %p155
      // Predicated region
      $region9: #{tpu_custom_call.1} parent=5 // pred_check
        _
      $region10: #{tpu_custom_call.1} parent=5 // pred_check_branch
        %158 = sbr.rel (%p155) target = $region12
      $region11: #{tpu_custom_call.1} parent=5 // pred_region
        %s159 = ssub.s32 %s18, 1
        // Predicated region
        $region13: #{tpu_custom_call.1} parent=11 // pred_check
          %p160 = pneg %p77
        $region14: #{tpu_custom_call.1} parent=11 // pred_check_branch
          %162 = sbr.rel (%p160) target = $region16
        $region15: #{tpu_custom_call.1} parent=11 // pred_region
          %s164 = ssub.s32 4096, 4096
          %165 = vsyncadd [#allocation7], %s164
          %s166 = sshll.u32 [#allocation6], 4
          %s167 = int_to_ptr.vmem [resolvable:$true] %s166
          %172 = dma.hbm_to_vmem [thread:$0]  %s1, 4096, %s167, [#allocation7], 128, 128, 8
        $region16: #{tpu_custom_call.1} parent=11 // pred_fallthru
          _
        // Predicated region
        $region17: #{tpu_custom_call.1} parent=11 // pred_check
          %p173 = pneg %p98
        $region18: #{tpu_custom_call.1} parent=11 // pred_check_branch
          %175 = sbr.rel (%p173) target = $region20
        $region19: #{tpu_custom_call.1} parent=11 // pred_region
          %s177 = ssub.s32 4096, 4096
          %178 = vsyncadd [#allocation7], %s177
          %s179 = sshll.u32 [#allocation8], 4
          %s180 = int_to_ptr.vmem [resolvable:$true] %s179
          %185 = dma.hbm_to_vmem [thread:$0]  %s2, 4096, %s180, [#allocation7], 128, 128, 8
        $region20: #{tpu_custom_call.1} parent=11 // pred_fallthru
          _
        // Predicated region
        $region21: #{tpu_custom_call.1} parent=11 // pred_check
          %p186 = pneg %p119
        $region22: #{tpu_custom_call.1} parent=11 // pred_check_branch
          %188 = sbr.rel (%p186) target = $region24
        $region23: #{tpu_custom_call.1} parent=11 // pred_region
          %s190 = ssub.s32 256, 256
          %191 = vsyncadd [#allocation10], %s190
          %s192 = sshll.u32 [#allocation9], 4
          %s193 = int_to_ptr.vmem [resolvable:$true] %s192
          %198 = dma.hbm_to_vmem [thread:$0]  %s3, 256, %s193, [#allocation10], 128, 128, 8
        $region24: #{tpu_custom_call.1} parent=11 // pred_fallthru
          _
      $region12: #{tpu_custom_call.1} parent=5 // pred_fallthru
        _
      %p199 = scmp.lt.s32.totalorder %s18, 4
      // Predicated region
      $region25: #{tpu_custom_call.1} parent=5 // pred_check
        %p200 = pneg %p199
      $region26: #{tpu_custom_call.1} parent=5 // pred_check_branch
        %202 = sbr.rel (%p200) target = $region28
      $region27: #{tpu_custom_call.1} parent=5 // pred_region
        // Predicated region
        $region29: #{tpu_custom_call.1} parent=27 // pred_check
          %p203 = pneg %p50
        $region30: #{tpu_custom_call.1} parent=27 // pred_check_branch
          %205 = sbr.rel (%p203) target = $region32
        $region31: #{tpu_custom_call.1} parent=27 // pred_region
          %s206 = sand.u32 %s40, 1
          %s207 = scalar_lea.sflag [#allocation4], %s206
          %s208 = sand.u32 %s40, 1
          %s209 = smul.addr %s208, 8
          %s210 = scalar_lea.vmem [#allocation3], %s209
          %s212 = ssub.s32 128, 128
          %213 = vsyncadd %s207, %s212
          %s214 = smul.addr %s25, 128
          %s215 = scalar_lea.hbm %s0, %s214
          %s217 = sshll.u32 %s210, 4
          %s218 = int_to_ptr.vmem [resolvable:$true] %s217
          %220 = dma.hbm_to_vmem [thread:$0]  %s215, 128, %s218, %s207
        $region32: #{tpu_custom_call.1} parent=27 // pred_fallthru
          _
      $region28: #{tpu_custom_call.1} parent=5 // pred_fallthru
        _
      %p221 = scmp.le.s32.totalorder 1, %s18
      %p222 = scmp.lt.s32.totalorder %s18, 5
      %p223 = pnand %p221, %p222
      %p224 = pneg %p223
      // Predicated region
      $region33: #{tpu_custom_call.1} parent=5 // pred_check
        _
      $region34: #{tpu_custom_call.1} parent=5 // pred_check_branch
        %226 = sbr.rel (%p223) target = $region36
      $region35: #{tpu_custom_call.1} parent=5 // pred_region
        %s227 = ssub.s32 %s18, 1
        %s228 = sand.u32 %s43, 1
        %s229 = scalar_lea.sflag [#allocation4], %s228
        %s230 = sand.u32 %s43, 1
        %s231 = smul.addr %s230, 8
        %s232 = scalar_lea.vmem [#allocation3], %s231
        // Predicated region
        $region37: #{tpu_custom_call.1} parent=35 // pred_check
          %p233 = pneg %p56
        $region38: #{tpu_custom_call.1} parent=35 // pred_check_branch
          %235 = sbr.rel (%p233) target = $region40
        $region39: #{tpu_custom_call.1} parent=35 // pred_region
          %236 = dma.done %s229, 128
        $region40: #{tpu_custom_call.1} parent=35 // pred_fallthru
          _
        // Predicated region
        $region41: #{tpu_custom_call.1} parent=35 // pred_check
          %p237 = pneg %p77
        $region42: #{tpu_custom_call.1} parent=35 // pred_check_branch
          %239 = sbr.rel (%p237) target = $region44
        $region43: #{tpu_custom_call.1} parent=35 // pred_region
          %240 = dma.done [#allocation7], 4096
        $region44: #{tpu_custom_call.1} parent=35 // pred_fallthru
          _
        // Predicated region
        $region45: #{tpu_custom_call.1} parent=35 // pred_check
          %p241 = pneg %p98
        $region46: #{tpu_custom_call.1} parent=35 // pred_check_branch
          %243 = sbr.rel (%p241) target = $region48
        $region47: #{tpu_custom_call.1} parent=35 // pred_region
          %244 = dma.done [#allocation7], 4096
        $region48: #{tpu_custom_call.1} parent=35 // pred_fallthru
          _
        // Predicated region
        $region49: #{tpu_custom_call.1} parent=35 // pred_check
          %p245 = pneg %p119
        $region50: #{tpu_custom_call.1} parent=35 // pred_check_branch
          %247 = sbr.rel (%p245) target = $region52
        $region51: #{tpu_custom_call.1} parent=35 // pred_region
          %248 = dma.done [#allocation10], 256
        $region52: #{tpu_custom_call.1} parent=35 // pred_fallthru
          _
        %s249 = sand.u32 %s43, 1
        %s250 = scalar_lea.sflag [#allocation4], %s249
        %s251 = sand.u32 %s43, 1
        %s252 = smul.addr %s251, 8
        %s253 = scalar_lea.vmem [#allocation3], %s252
        %p254 = pneg %p56
        %p255 = pneg %p53
        %p256 = pneg %p77
        %p257 = pneg %p74
        %p258 = pneg %p98
        %p259 = pneg %p95
        %p260 = pneg %p119
        %p261 = pneg %p116
        %p262 = pneg %p145
        %p263 = pneg %p142
        %s264 = sand.u32 %s132, 1
        %s265 = scalar_lea.sflag [#allocation5], %s264
        %s266 = sand.u32 %s132, 1
        %s267 = smul.addr %s266, 8
        %s268 = scalar_lea.vmem [#allocation11], %s267
        %p269 = scmp.eq.s32.totalorder %s28, 0
        // Predicated region
        $region53: #{tpu_custom_call.1} parent=35 // pred_check
          %p270 = pneg %p269
        $region54: #{tpu_custom_call.1} parent=35 // pred_check_branch
          %272 = sbr.rel (%p270) target = $region56
        $region55: #{tpu_custom_call.1} parent=35 // pred_region
          %v273 = vld [vmem:[%s232] sm:$0xff]
          %274 = vst [vmem:[#allocation2] sm:$0xff] %v273
        $region56: #{tpu_custom_call.1} parent=35 // pred_fallthru
          _
        %v275 = vld [vmem:[#allocation2] sm:$0xff]
        %s276 = smul.u32 %s28, 8
        %s277 = scalar_lea.vmem [#allocation9], %s276
        %v278 = vld [vmem:[%s277] sm:$0xff]
        %s279 = smul.u32 %s28, 128
        %s280 = scalar_lea.vmem [#allocation6], %s279
        %v281 = vld [vmem:[%s280] sm:$0xff]
        %v282 = vld [vmem:[%s280 + $0x8] sm:$0xff]
        %v283 = vld [vmem:[%s280 + $0x10] sm:$0xff]
        %v284 = vld [vmem:[%s280 + $0x18] sm:$0xff]
        %v285 = vld [vmem:[%s280 + $0x20] sm:$0xff]
        %v286 = vld [vmem:[%s280 + $0x28] sm:$0xff]
        %v287 = vld [vmem:[%s280 + $0x30] sm:$0xff]
        %v288 = vld [vmem:[%s280 + $0x38] sm:$0xff]
        %v289 = vld [vmem:[%s280 + $0x40] sm:$0xff]
        %v290 = vld [vmem:[%s280 + $0x48] sm:$0xff]
        %v291 = vld [vmem:[%s280 + $0x50] sm:$0xff]
        %v292 = vld [vmem:[%s280 + $0x58] sm:$0xff]
        %v293 = vld [vmem:[%s280 + $0x60] sm:$0xff]
        %v294 = vld [vmem:[%s280 + $0x68] sm:$0xff]
        %v295 = vld [vmem:[%s280 + $0x70] sm:$0xff]
        %v296 = vld [vmem:[%s280 + $0x78] sm:$0xff]
        %v297 = vlaneseq
        %v298 = vshrl.u32 %v297, 7
        %v299 = vsub.s32 0, %v298
        %v300 = vrot.slane %v278, %v299
        %301 = vmatprep.subr.mxu0 0.0
        %302 = vmatpush1.msra.mxu0 %v281
        %303 = vmatprep.subr.mxu0 0.0
        %304 = vmatpush1.msra.mxu0 %v282
        %305 = vmatprep.subr.mxu0 0.0
        %306 = vmatpush1.msra.mxu0 %v283
        %307 = vmatprep.subr.mxu0 0.0
        %308 = vmatpush1.msra.mxu0 %v284
        %309 = vmatprep.subr.mxu0 0.0
        %310 = vmatpush1.msra.mxu0 %v285
        %311 = vmatprep.subr.mxu0 0.0
        %312 = vmatpush1.msra.mxu0 %v286
        %313 = vmatprep.subr.mxu0 0.0
        %314 = vmatpush1.msra.mxu0 %v287
        %315 = vmatprep.subr.mxu0 0.0
        %316 = vmatpush1.msra.mxu0 %v288
        %317 = vmatprep.subr.mxu0 0.0
        %318 = vmatpush1.msra.mxu0 %v289
        %319 = vmatprep.subr.mxu0 0.0
        %320 = vmatpush1.msra.mxu0 %v290
        %321 = vmatprep.subr.mxu0 0.0
        %322 = vmatpush1.msra.mxu0 %v291
        %323 = vmatprep.subr.mxu0 0.0
        %324 = vmatpush1.msra.mxu0 %v292
        %325 = vmatprep.subr.mxu0 0.0
        %326 = vmatpush1.msra.mxu0 %v293
        %327 = vmatprep.subr.mxu0 0.0
        %328 = vmatpush1.msra.mxu0 %v294
        %329 = vmatprep.subr.mxu0 0.0
        %330 = vmatpush1.msra.mxu0 %v295
        %331 = vmatprep.subr.mxu0 0.0
        %332 = vmatpush1.msra.mxu0 %v296
        %333 = vmatprep.subr.mxu0 0.0
        %334 = vmatpush1.msra.mxu0 0.0
        %335 = vmatprep.subr.mxu0 0.0
        %336 = vmatpush1.msra.mxu0 0.0
        %337 = vmatprep.subr.mxu0 0.0
        %338 = vmatpush1.msra.mxu0 0.0
        %339 = vmatprep.subr.mxu0 0.0
        %340 = vmatpush1.msra.mxu0 0.0
        %341 = vmatprep.subr.mxu0 0.0
        %342 = vmatpush1.msra.mxu0 0.0
        %343 = vmatprep.subr.mxu0 0.0
        %344 = vmatpush1.msra.mxu0 0.0
        %345 = vmatprep.subr.mxu0 0.0
        %346 = vmatpush1.msra.mxu0 0.0
        %347 = vmatprep.subr.mxu0 0.0
        %348 = vmatpush1.msra.mxu0 0.0
        %349 = vmatprep.subr.mxu0 0.0
        %350 = vmatpush1.msra.mxu0 0.0
        %351 = vmatprep.subr.mxu0 0.0
        %352 = vmatpush1.msra.mxu0 0.0
        %353 = vmatprep.subr.mxu0 0.0
        %354 = vmatpush1.msra.mxu0 0.0
        %355 = vmatprep.subr.mxu0 0.0
        %356 = vmatpush1.msra.mxu0 0.0
        %357 = vmatprep.subr.mxu0 0.0
        %358 = vmatpush1.msra.mxu0 0.0
        %359 = vmatprep.subr.mxu0 0.0
        %360 = vmatpush1.msra.mxu0 0.0
        %361 = vmatprep.subr.mxu0 0.0
        %362 = vmatpush1.msra.mxu0 0.0
        %363 = vmatprep.subr.mxu0 0.0
        %364 = vmatpush1.msra.mxu0 0.0
        %365 = vmatprep.mubr.f32.mxu0 0.0
        %366 = vmatmul.mubr.f32.gmra.mrb[0].mxu0 %v275
        %v367 = vpop.f32.mrb[0].mxu0
        %v368 = vadd.f32 %v300, %v367
        %v369 = vpop.f32.mrb[0].mxu0
        %370 = vdwg.mxu0
        %v371 = vmax.f32 %v368, 0.0
        %s372 = scalar_lea.vmem [#allocation8], %s279
        %v373 = vld [vmem:[%s372] sm:$0xff]
        %v374 = vld [vmem:[%s372 + $0x8] sm:$0xff]
        %v375 = vld [vmem:[%s372 + $0x10] sm:$0xff]
        %v376 = vld [vmem:[%s372 + $0x18] sm:$0xff]
        %v377 = vld [vmem:[%s372 + $0x20] sm:$0xff]
        %v378 = vld [vmem:[%s372 + $0x28] sm:$0xff]
        %v379 = vld [vmem:[%s372 + $0x30] sm:$0xff]
        %v380 = vld [vmem:[%s372 + $0x38] sm:$0xff]
        %v381 = vld [vmem:[%s372 + $0x40] sm:$0xff]
        %v382 = vld [vmem:[%s372 + $0x48] sm:$0xff]
        %v383 = vld [vmem:[%s372 + $0x50] sm:$0xff]
        %v384 = vld [vmem:[%s372 + $0x58] sm:$0xff]
        %v385 = vld [vmem:[%s372 + $0x60] sm:$0xff]
        %v386 = vld [vmem:[%s372 + $0x68] sm:$0xff]
        %v387 = vld [vmem:[%s372 + $0x70] sm:$0xff]
        %v388 = vld [vmem:[%s372 + $0x78] sm:$0xff]
        %389 = vmatprep.subr.mxu0 0.0
        %390 = vmatpush1.msra.mxu0 %v373
        %391 = vmatprep.subr.mxu0 0.0
        %392 = vmatpush1.msra.mxu0 %v374
        %393 = vmatprep.subr.mxu0 0.0
        %394 = vmatpush1.msra.mxu0 %v375
        %395 = vmatprep.subr.mxu0 0.0
        %396 = vmatpush1.msra.mxu0 %v376
        %397 = vmatprep.subr.mxu0 0.0
        %398 = vmatpush1.msra.mxu0 %v377
        %399 = vmatprep.subr.mxu0 0.0
        %400 = vmatpush1.msra.mxu0 %v378
        %401 = vmatprep.subr.mxu0 0.0
        %402 = vmatpush1.msra.mxu0 %v379
        %403 = vmatprep.subr.mxu0 0.0
        %404 = vmatpush1.msra.mxu0 %v380
        %405 = vmatprep.subr.mxu0 0.0
        %406 = vmatpush1.msra.mxu0 %v381
        %407 = vmatprep.subr.mxu0 0.0
        %408 = vmatpush1.msra.mxu0 %v382
        %409 = vmatprep.subr.mxu0 0.0
        %410 = vmatpush1.msra.mxu0 %v383
        %411 = vmatprep.subr.mxu0 0.0
        %412 = vmatpush1.msra.mxu0 %v384
        %413 = vmatprep.subr.mxu0 0.0
        %414 = vmatpush1.msra.mxu0 %v385
        %415 = vmatprep.subr.mxu0 0.0
        %416 = vmatpush1.msra.mxu0 %v386
        %417 = vmatprep.subr.mxu0 0.0
        %418 = vmatpush1.msra.mxu0 %v387
        %419 = vmatprep.subr.mxu0 0.0
        %420 = vmatpush1.msra.mxu0 %v388
        %421 = vmatprep.subr.mxu0 0.0
        %422 = vmatpush1.msra.mxu0 0.0
        %423 = vmatprep.subr.mxu0 0.0
        %424 = vmatpush1.msra.mxu0 0.0
        %425 = vmatprep.subr.mxu0 0.0
        %426 = vmatpush1.msra.mxu0 0.0
        %427 = vmatprep.subr.mxu0 0.0
        %428 = vmatpush1.msra.mxu0 0.0
        %429 = vmatprep.subr.mxu0 0.0
        %430 = vmatpush1.msra.mxu0 0.0
        %431 = vmatprep.subr.mxu0 0.0
        %432 = vmatpush1.msra.mxu0 0.0
        %433 = vmatprep.subr.mxu0 0.0
        %434 = vmatpush1.msra.mxu0 0.0
        %435 = vmatprep.subr.mxu0 0.0
        %436 = vmatpush1.msra.mxu0 0.0
        %437 = vmatprep.subr.mxu0 0.0
        %438 = vmatpush1.msra.mxu0 0.0
        %439 = vmatprep.subr.mxu0 0.0
        %440 = vmatpush1.msra.mxu0 0.0
        %441 = vmatprep.subr.mxu0 0.0
        %442 = vmatpush1.msra.mxu0 0.0
        %443 = vmatprep.subr.mxu0 0.0
        %444 = vmatpush1.msra.mxu0 0.0
        %445 = vmatprep.subr.mxu0 0.0
        %446 = vmatpush1.msra.mxu0 0.0
        %447 = vmatprep.subr.mxu0 0.0
        %448 = vmatpush1.msra.mxu0 0.0
        %449 = vmatprep.subr.mxu0 0.0
        %450 = vmatpush1.msra.mxu0 0.0
        %451 = vmatprep.subr.mxu0 0.0
        %452 = vmatpush1.msra.mxu0 0.0
        %453 = vmatprep.mubr.f32.mxu0 0.0
        %454 = vmatmul.mubr.f32.gmra.mrb[0].mxu0 %v371
        %v455 = vpop.f32.mrb[0].mxu0
        %v456 = vadd.f32 0.0, %v455
        %v457 = vpop.f32.mrb[0].mxu0
        %458 = vdwg.mxu0
        %v459 = vadd.f32 %v275, %v456
        %v460 = vlaneseq
        %v461 = vshrl.u32 %v460, 7
        %v462 = vsub.s32 1, %v461
        %v463 = vrot.slane %v278, %v462
        %v464 = vadd.f32 %v459, %v463
        %465 = vadd.xlane.f32.xlu0 %v464
        %v466 = vpop.xlane.xlu0 %465
        %v467 = vmul.f32 %v466, 0.03125
        %v468 = vmul.f32 %v464, %v464
        %469 = vadd.xlane.f32.xlu0 %v468
        %v470 = vpop.xlane.xlu0 %469
        %v471 = vmul.f32 %v470, 0.03125
        %v472 = vmul.f32 %v467, %v467
        %v473 = vsub.f32 %v471, %v472
        %v474 = vmax.f32 %v473, 0.0
        %v475 = vsub.f32 %v464, %v467
        %v476 = vadd.f32 %v474, 1e-12
        %v477 = vrsqrt.pop %v476
        %v478 = vmul.f32 %v475, %v477
        %v479 = vlaneseq
        %v480 = vshrl.u32 %v479, 7
        %v481 = vsub.s32 2, %v480
        %v482 = vrot.slane %v278, %v481
        %v483 = vmul.f32 %v478, %v482
        %v484 = vlaneseq
        %v485 = vshrl.u32 %v484, 7
        %v486 = vsub.s32 3, %v485
        %v487 = vrot.slane %v278, %v486
        %v488 = vadd.f32 %v483, %v487
        %489 = vst [vmem:[#allocation2] sm:$0xff] %v488
        %p490 = scmp.eq.s32.totalorder %s28, 1
        // Predicated region
        $region57: #{tpu_custom_call.1} parent=35 // pred_check
          %p491 = pneg %p490
        $region58: #{tpu_custom_call.1} parent=35 // pred_check_branch
          %493 = sbr.rel (%p491) target = $region60
        $region59: #{tpu_custom_call.1} parent=35 // pred_region
          %494 = vst [vmem:[%s268] sm:$0xff] %v488
        $region60: #{tpu_custom_call.1} parent=35 // pred_fallthru
          _
        %s495 = sand.u32 %s132, 1
        %s496 = scalar_lea.sflag [#allocation5], %s495
        %s497 = sand.u32 %s132, 1
        %s498 = smul.addr %s497, 8
        %s499 = scalar_lea.vmem [#allocation11], %s498
        // Predicated region
        $region61: #{tpu_custom_call.1} parent=35 // pred_check
          %p500 = pneg %p142
        $region62: #{tpu_custom_call.1} parent=35 // pred_check_branch
          %502 = sbr.rel (%p500) target = $region64
        $region63: #{tpu_custom_call.1} parent=35 // pred_region
          %s504 = ssub.s32 128, 128
          %505 = vsyncadd %s496, %s504
          %s506 = smul.addr %s27, 128
          %s507 = scalar_lea.hbm %s4, %s506
          %s509 = sshll.u32 %s499, 4
          %s510 = int_to_ptr.vmem [resolvable:$true] %s509
          %512 = dma.vmem_to_hbm [thread:$0]  %s510, 128, %s507, %s496
        $region64: #{tpu_custom_call.1} parent=35 // pred_fallthru
          _
      $region36: #{tpu_custom_call.1} parent=5 // pred_fallthru
        _
      %p513 = scmp.le.s32.totalorder 2, %s18
      // Predicated region
      $region65: #{tpu_custom_call.1} parent=5 // pred_check
        %p514 = pneg %p513
      $region66: #{tpu_custom_call.1} parent=5 // pred_check_branch
        %516 = sbr.rel (%p514) target = $region68
      $region67: #{tpu_custom_call.1} parent=5 // pred_region
        %s517 = ssub.s32 %s18, 2
        // Predicated region
        $region69: #{tpu_custom_call.1} parent=67 // pred_check
          %p518 = pneg %p148
        $region70: #{tpu_custom_call.1} parent=67 // pred_check_branch
          %520 = sbr.rel (%p518) target = $region72
        $region71: #{tpu_custom_call.1} parent=67 // pred_region
          %s521 = sand.u32 %s133, 1
          %s522 = scalar_lea.sflag [#allocation5], %s521
          %s523 = sand.u32 %s133, 1
          %s524 = smul.addr %s523, 8
          %s525 = scalar_lea.vmem [#allocation11], %s524
          %526 = dma.done %s522, 128
        $region72: #{tpu_custom_call.1} parent=67 // pred_fallthru
          _
      $region68: #{tpu_custom_call.1} parent=5 // pred_fallthru
        _
    $region6: #{tpu_custom_call.1} parent=1 // loop_footer
      %s22 = sadd.s32 1, %s18
    $region7: #{tpu_custom_call.1} parent=1 // loop_footer_branch
      %17 = sbr.rel target = $region3
    $region8: #{tpu_custom_call.1} parent=1 // loop_exit
      _
    %527 = vsyncpa [#allocation4], 1
    %s528 = scalar_lea.sflag [#allocation4], 1
    %529 = vsyncpa %s528, 1
    %530 = vsyncpa [#allocation7], 1
    %531 = vsyncpa [#allocation10], 1
    %532 = vsyncpa [#allocation5], 1
    %s533 = scalar_lea.sflag [#allocation5], 1
    %534 = vsyncpa %s533, 1

</llo_original>
